<compile_context>
chip_gen: v6e
topology: v6e:2x2x1
jax: 0.10.0
libtpu: 0.0.40
codegen_flags: <defaults>
</compile_context>

<pallas_src>
import math

import jax
import jax.numpy as jnp
from jax.experimental import pallas as pl
from jax.experimental.pallas import tpu as pltpu

LANE = 128


def _round_up(n, m):
    return ((n + m - 1) // m) * m


def _pad2(a, rows, cols):
    """Zero-pad a 2-D array up to (rows, cols)."""
    a = a.astype(jnp.float32)
    r, c = a.shape
    return jnp.pad(a, ((0, rows - r), (0, cols - c)))


# --------------------------------------------------------------------------
# Conditioning branch: Linear(1,128) -> ReLU -> Linear(128,128) -> ReLU
#                       -> Linear(128,1), evaluated once per sigma value.
# --------------------------------------------------------------------------
def _cond_kernel(sig_ref, cw1_ref, cb1_ref, cw2_ref, cb2_ref, cw3t_ref, cb3_ref,
                 out_ref):
    f32 = jnp.float32
    s = sig_ref[...]                                              # (N, 1)
    h = jnp.maximum(s * cw1_ref[...] + cb1_ref[...], 0.0)         # (N, 128)
    h = jnp.maximum(
        jnp.dot(h, cw2_ref[...], preferred_element_type=f32) + cb2_ref[...],
        0.0)                                                      # (N, 128)
    # Width-1 output layer -> lane reduction on the XLU instead of a N=1 matmul.
    out_ref[...] = (jnp.sum(h * cw3t_ref[...], axis=-1, keepdims=True)
                    + cb3_ref[...])                               # (N, 1)


# --------------------------------------------------------------------------
# Body MLP: z = cat(x, e) -> hidden layers (ReLU) -> head, batch-tiled.
# --------------------------------------------------------------------------
def make_body_kernel(num_hidden, in_dim):
    def kernel(x_ref, e_ref, w1x_ref, w1e_ref, b1_ref, *rest):
        hidden_refs = rest[:2 * (num_hidden - 1)]
        whp_ref, bhp_ref, out_ref = rest[2 * (num_hidden - 1):]

        f32 = jnp.float32
        x = x_ref[...]                                            # (TB, in_dim)
        e = e_ref[...]                                            # (TB, 1)
        w1x = w1x_ref[...]                                        # (in_dim, H0p)

        # First layer: cat(x, e) @ W1 == x @ W1x + e * W1e.  K=in_dim is tiny,
        # so do it as unrolled rank-1 VPU products instead of a degenerate
        # MXU matmul.
        z = e * w1e_ref[...] + b1_ref[...]                        # (TB, H0p)
        for k in range(in_dim):
            z = z + x[:, k:k + 1] * w1x[k:k + 1, :]
        z = jnp.maximum(z, 0.0)

        # Remaining hidden layers: lane-padded (Hp x Hp) MXU matmuls.
        for li in range(num_hidden - 1):
            w = hidden_refs[2 * li][...]
            b = hidden_refs[2 * li + 1][...]
            z = jnp.maximum(
                jnp.dot(z, w, preferred_element_type=f32) + b, 0.0)

        # Head: output padded to a multiple of 128 lanes -> dense vst.
        out_ref[...] = (jnp.dot(z, whp_ref[...], preferred_element_type=f32)
                        + bhp_ref[...])

    return kernel


# --------------------------------------------------------------------------
# Wrapper
# --------------------------------------------------------------------------
def ndfc_forward(params, sigmas, x, t, *, block_b=1024):
    """Pallas-backed NDFC forward (sigmas is not None branch)."""
    num_hidden = len(params["hidden"])
    B, in_dim = x.shape
    wh, bh = params["head"]
    out_dim = wh.shape[1]

    # ---- conditioning branch, hoisted out of the per-row path --------------
    (cw1, cb1), (cw2, cb2), (cw3, cb3) = params["cond"]
    num_sigmas = sigmas.shape[0]
    sig_col = sigmas[:, None].astype(jnp.float32)                 # (S, 1)
    e_table = pl.pallas_call(
        _cond_kernel,
        out_shape=jax.ShapeDtypeStruct((num_sigmas, 1), jnp.float32),
        in_specs=[pl.BlockSpec(memory_space=pltpu.MemorySpace.VMEM)] * 7,
        out_specs=pl.BlockSpec(memory_space=pltpu.MemorySpace.VMEM),
    )(sig_col, cw1, cb1, cw2, cb2, cw3.T, cb3)
    # glue: tiny integer gather (same role as sigmas[t] in the reference)
    e = e_table[t].astype(jnp.float32)                            # (B, 1)

    # ---- pad feature dims to lane width (exact: zero padding) --------------
    h_dims = [w.shape[1] for (w, _) in params["hidden"]]
    h_pad = [_round_up(d, LANE) for d in h_dims]
    out_pad = _round_up(out_dim, LANE)

    w1, b1 = params["hidden"][0]
    weight_inputs = [_pad2(w1[:in_dim, :], in_dim, h_pad[0]),     # W1x
                     _pad2(w1[in_dim:in_dim + 1, :], 1, h_pad[0]),  # W1e
                     _pad2(b1, 1, h_pad[0])]
    prev_pad = h_pad[0]
    for li, (w, b) in enumerate(params["hidden"][1:], start=1):
        weight_inputs += [_pad2(w, prev_pad, h_pad[li]),
                          _pad2(b, 1, h_pad[li])]
        prev_pad = h_pad[li]
    weight_inputs += [_pad2(wh, prev_pad, out_pad), _pad2(bh, 1, out_pad)]

    # ---- batch tiling -------------------------------------------------------
    x = x.astype(jnp.float32)
    tb = min(block_b, _round_up(B, 8))
    b_pad = _round_up(B, tb)
    if b_pad != B:
        x = jnp.pad(x, ((0, b_pad - B), (0, 0)))
        e = jnp.pad(e, ((0, b_pad - B), (0, 0)))
    grid = (b_pad // tb,)

    act_specs = [pl.BlockSpec((tb, in_dim), lambda i: (i, 0)),    # x tile
                 pl.BlockSpec((tb, 1), lambda i: (i, 0))]         # e tile
    # weights: same block index every step -> stay resident in VMEM
    w_specs = [pl.BlockSpec(w.shape, lambda i: (0, 0)) for w in weight_inputs]

    kernel = make_body_kernel(num_hidden, in_dim)
    out_padded = pl.pallas_call(
        kernel,
        out_shape=jax.ShapeDtypeStruct((b_pad, out_pad), jnp.float32),
        grid=grid,
        in_specs=act_specs + w_specs,
        out_specs=pl.BlockSpec((tb, out_pad), lambda i: (i, 0)),
        compiler_params=pltpu.CompilerParams(
            dimension_semantics=("parallel",),
            vmem_limit_bytes=32 * 1024 * 1024),
    )(x, e, *weight_inputs)

    return out_padded[:B, :out_dim]


# --------------------------------------------------------------------------
# Pure-JAX reference mirroring the PyTorch forward exactly.
# --------------------------------------------------------------------------
def ndfc_ref(params, sigmas, x, t):
    s = sigmas[t][:, None]
    (cw1, cb1), (cw2, cb2), (cw3, cb3) = params["cond"]
    h = jnp.maximum(s @ cw1 + cb1, 0.0)
    h = jnp.maximum(h @ cw2 + cb2, 0.0)
    e = h @ cw3 + cb3
    z = jnp.concatenate([x, e], axis=1)
    for w, b in params["hidden"]:
        z = jnp.maximum(z @ w + b, 0.0)
    wh, bh = params["head"]
    return z @ wh + bh


def init_linear(key, fan_in, fan_out):
    """Deterministic PyTorch-style uniform init; returns (W.T, b_row)."""
    kw, kb = jax.random.split(key)
    bound = 1.0 / math.sqrt(fan_in)
    wt = jax.random.uniform(kw, (fan_in, fan_out), jnp.float32, -bound, bound)
    b = jax.random.uniform(kb, (1, fan_out), jnp.float32, -bound, bound)
    return wt, b


if __name__ == "__main__":
    B, in_dim, out_dim = 8, 4, 2
    hidden_dims = (32, 32)
    num_sigmas = 10

    key = jax.random.PRNGKey(0)
    keys = iter(jax.random.split(key, 16))

    sigmas = jnp.exp(
        jnp.linspace(jnp.log(1.0), jnp.log(0.01), num_sigmas)).astype(jnp.float32)

    # conditioning branch: Linear(1,128), Linear(128,128), Linear(128,1)
    cond = [init_linear(next(keys), 1, 128),
            init_linear(next(keys), 128, 128),
            init_linear(next(keys), 128, 1)]
    # MLP body: first layer sees in_dim + 1 (concat with sigma embedding)
    hidden = []
    current = in_dim + 1
    for d in hidden_dims:
        hidden.append(init_linear(next(keys), current, d))
        current = d
    head = init_linear(next(keys), current, out_dim)
    params = {"cond": cond, "hidden": hidden, "head": head}

    x = jax.random.normal(next(keys), (B, in_dim), jnp.float32)
    t = jax.random.randint(next(keys), (B,), 0, num_sigmas)

    out = jax.block_until_ready(ndfc_forward(params, sigmas, x, t))
    ref = ndfc_ref(params, sigmas, x, t)
    assert out.shape == (B, out_dim)
    max_err = float(jnp.max(jnp.abs(out - ref)))
    if max_err > 1e-4:
        raise AssertionError(f"Pallas NDFC mismatch vs reference: {max_err}")

    # Second check: batch that is not a multiple of the tile -> exercises the
    # grid, batch padding and resident-weight BlockSpecs.
    B2 = 300
    x2 = jax.random.normal(next(keys), (B2, in_dim), jnp.float32)
    t2 = jax.random.randint(next(keys), (B2,), 0, num_sigmas)
    out2 = jax.block_until_ready(ndfc_forward(params, sigmas, x2, t2, block_b=64))
    ref2 = ndfc_ref(params, sigmas, x2, t2)
    max_err2 = float(jnp.max(jnp.abs(out2 - ref2)))
    if max_err2 > 1e-4:
        raise AssertionError(f"Pallas NDFC (tiled) mismatch vs reference: {max_err2}")

    print("KERNEL_OK")
</pallas_src>

<mosaic_0001>
module attributes {stable_mosaic.version = 11 : i64} {
  func.func @_cond_kernel(%arg0: memref<10x1xf32, #tpu.memory_space<vmem>>, %arg1: memref<1x128xf32, #tpu.memory_space<vmem>>, %arg2: memref<1x128xf32, #tpu.memory_space<vmem>>, %arg3: memref<128x128xf32, #tpu.memory_space<vmem>>, %arg4: memref<1x128xf32, #tpu.memory_space<vmem>>, %arg5: memref<1x128xf32, #tpu.memory_space<vmem>>, %arg6: memref<1x1xf32, #tpu.memory_space<vmem>>, %arg7: memref<10x1xf32, #tpu.memory_space<vmem>>) attributes {dimension_semantics = [], scalar_prefetch = 0 : i64, scratch_operands = 0 : i64, tpu.core_type = #tpu.core_type<tc>} {
    %c0 = arith.constant 0 : index
    %c0_0 = arith.constant 0 : index
    %0 = vector.load %arg0[%c0, %c0_0] : memref<10x1xf32, #tpu.memory_space<vmem>>, vector<10x1xf32>
    %c0_1 = arith.constant 0 : index
    %c0_2 = arith.constant 0 : index
    %1 = vector.load %arg1[%c0_1, %c0_2] : memref<1x128xf32, #tpu.memory_space<vmem>>, vector<1x128xf32>
    %2 = vector.broadcast %0 : vector<10x1xf32> to vector<10x128xf32>
    %3 = vector.broadcast %1 : vector<1x128xf32> to vector<10x128xf32>
    %4 = arith.mulf %2, %3 : vector<10x128xf32>
    %c0_3 = arith.constant 0 : index
    %c0_4 = arith.constant 0 : index
    %5 = vector.load %arg2[%c0_3, %c0_4] : memref<1x128xf32, #tpu.memory_space<vmem>>, vector<1x128xf32>
    %6 = vector.broadcast %5 : vector<1x128xf32> to vector<10x128xf32>
    %7 = arith.addf %4, %6 : vector<10x128xf32>
    %cst = arith.constant 0.000000e+00 : f32
    %8 = vector.broadcast %cst : f32 to vector<10x128xf32>
    %9 = arith.maximumf %7, %8 : vector<10x128xf32>
    %c0_5 = arith.constant 0 : index
    %c0_6 = arith.constant 0 : index
    %10 = vector.load %arg3[%c0_5, %c0_6] : memref<128x128xf32, #tpu.memory_space<vmem>>, vector<128x128xf32>
    %cst_7 = arith.constant dense<0.000000e+00> : vector<10x128xf32>
    %11 = tpu.matmul %9, %10, %cst_7 {dimension_numbers = #tpu.dot_dimension_numbers<[1], [0], [0], [1], [0, 0, 1, 1], [], []>} : vector<10x128xf32>, vector<128x128xf32>, vector<10x128xf32> -> vector<10x128xf32>
    %c0_8 = arith.constant 0 : index
    %c0_9 = arith.constant 0 : index
    %12 = vector.load %arg4[%c0_8, %c0_9] : memref<1x128xf32, #tpu.memory_space<vmem>>, vector<1x128xf32>
    %13 = vector.broadcast %12 : vector<1x128xf32> to vector<10x128xf32>
    %14 = arith.addf %11, %13 : vector<10x128xf32>
    %cst_10 = arith.constant 0.000000e+00 : f32
    %15 = vector.broadcast %cst_10 : f32 to vector<10x128xf32>
    %16 = arith.maximumf %14, %15 : vector<10x128xf32>
    %c0_11 = arith.constant 0 : index
    %c0_12 = arith.constant 0 : index
    %17 = vector.load %arg5[%c0_11, %c0_12] : memref<1x128xf32, #tpu.memory_space<vmem>>, vector<1x128xf32>
    %18 = vector.broadcast %17 : vector<1x128xf32> to vector<10x128xf32>
    %19 = arith.mulf %16, %18 : vector<10x128xf32>
    %cst_13 = arith.constant dense<0.000000e+00> : vector<10xf32>
    %20 = vector.multi_reduction <add>, %19, %cst_13 [1] : vector<10x128xf32> to vector<10xf32>
    %21 = vector.shape_cast %20 : vector<10xf32> to vector<10x1xf32>
    %c0_14 = arith.constant 0 : index
    %c0_15 = arith.constant 0 : index
    %22 = vector.load %arg6[%c0_14, %c0_15] : memref<1x1xf32, #tpu.memory_space<vmem>>, vector<1x1xf32>
    %23 = vector.broadcast %22 : vector<1x1xf32> to vector<10x1xf32>
    %24 = arith.addf %21, %23 : vector<10x1xf32>
    %c0_16 = arith.constant 0 : index
    %c0_17 = arith.constant 0 : index
    %25 = vector.load %arg7[%c0_16, %c0_17] : memref<10x1xf32, #tpu.memory_space<vmem>>, vector<10x1xf32>
    tpu.vector_store %arg7[%c0_16, %c0_17], %24 {strides = array<i32>} : memref<10x1xf32, #tpu.memory_space<vmem>>, vector<10x1xf32>,
    return
  }
}

</mosaic_0001>

<llo_original>
// kernel: tpu_custom_call.1
$region0: #{tpu_custom_call.1}
  #allocation0 [shape = 'u32[]', space=smem, size = 0x4, offset = 0x4, fixed_abs, tag = 'smem constant byte address 0x4 - core index']
  #allocation1 [shape = 'u32[144,128]{1,0:T(1,128)}', space=vmem, size = 0x12000, scoped, tag = 'internal scratch']
  #allocation2 [shape = 'f32[1,1]{1,0:T(1,128)S(1)}', space=vmem, size = 0x200, scoped, tag = 'scoped memory for tpu_custom_call.1']
  %s0 = inlined_call_operand.vmem [shape: f32[10,1], index: 0, kind: input, shape index: {}]
  %s1 = inlined_call_operand.vmem [shape: f32[1,128], index: 1, kind: input, shape index: {}]
  %s2 = inlined_call_operand.vmem [shape: f32[1,128], index: 2, kind: input, shape index: {}]
  %s3 = inlined_call_operand.hbm [shape: f32[128,128], index: 3, kind: input, shape index: {}]
  %s4 = inlined_call_operand.vmem [shape: f32[1,128], index: 4, kind: input, shape index: {}]
  %s5 = inlined_call_operand.vmem [shape: f32[1,128], index: 5, kind: input, shape index: {}]
  %s6 = inlined_call_operand.<no memory space> [shape: f32[1,1], index: 6, kind: input, shape index: {}]
  %s7 = inlined_call_operand.vmem [shape: f32[10,1], index: 7, kind: output, shape index: {}]
  %s8 = sld [smem:[#allocation0]]
  $region42: #{tpu_custom_call.1} parent=0
    _
  %s10 = ssub.s32 1, %s8
  %s11 = scalar_select 0, %s10, %s8
  %v12 = vstv %s6
  %13 = vst [vmem:[#allocation2] sm:$0x1] %v12
  $region1: #{tpu_custom_call.1} parent=0
    #allocation3 [shape = 'u8[65536]{0}', space=vmem, size = 0x10000, scoped, tag = 'input window, operand 3, single buffered']
    #allocation4 [shape = 's32[1]{0}', space=sflag, size = 0x4, scoped, tag = 'scoped memory for tpu_custom_call.1']
    %14 = vsyncpa [#allocation4], 0
    // Predicated region
    $region2: #{tpu_custom_call.1} parent=1 // pred_check
      _
    $region3: #{tpu_custom_call.1} parent=1 // pred_check_branch
      %16 = sbr.rel (0) target = $region5
    $region4: #{tpu_custom_call.1} parent=1 // pred_region
      _
    $region5: #{tpu_custom_call.1} parent=1 // pred_fallthru
      _
    // Predicated region
    $region6: #{tpu_custom_call.1} parent=1 // pred_check
      _
    $region7: #{tpu_custom_call.1} parent=1 // pred_check_branch
      %18 = sbr.rel (0) target = $region9
    $region8: #{tpu_custom_call.1} parent=1 // pred_region
      _
    $region9: #{tpu_custom_call.1} parent=1 // pred_fallthru
      _
    // Predicated region
    $region10: #{tpu_custom_call.1} parent=1 // pred_check
      _
    $region11: #{tpu_custom_call.1} parent=1 // pred_check_branch
      %20 = sbr.rel (0) target = $region13
    $region12: #{tpu_custom_call.1} parent=1 // pred_region
      _
    $region13: #{tpu_custom_call.1} parent=1 // pred_fallthru
      _
    // Predicated region
    $region14: #{tpu_custom_call.1} parent=1 // pred_check
      _
    $region15: #{tpu_custom_call.1} parent=1 // pred_check_branch
      %22 = sbr.rel (0) target = $region17
    $region16: #{tpu_custom_call.1} parent=1 // pred_region
      %s24 = ssub.s32 2048, 2048
      %25 = vsyncadd [#allocation4], %s24
      %s26 = sshll.u32 [#allocation3], 4
      %s27 = int_to_ptr.vmem [resolvable:$true] %s26
      %32 = dma.hbm_to_vmem [thread:$0]  %s3, 2048, %s27, [#allocation4], 128, 128, 8
    $region17: #{tpu_custom_call.1} parent=1 // pred_fallthru
      _
    // Predicated region
    $region18: #{tpu_custom_call.1} parent=1 // pred_check
      _
    $region19: #{tpu_custom_call.1} parent=1 // pred_check_branch
      %34 = sbr.rel (0) target = $region21
    $region20: #{tpu_custom_call.1} parent=1 // pred_region
      _
    $region21: #{tpu_custom_call.1} parent=1 // pred_fallthru
      _
    // Predicated region
    $region22: #{tpu_custom_call.1} parent=1 // pred_check
      _
    $region23: #{tpu_custom_call.1} parent=1 // pred_check_branch
      %36 = sbr.rel (0) target = $region25
    $region24: #{tpu_custom_call.1} parent=1 // pred_region
      _
    $region25: #{tpu_custom_call.1} parent=1 // pred_fallthru
      _
    // Predicated region
    $region26: #{tpu_custom_call.1} parent=1 // pred_check
      _
    $region27: #{tpu_custom_call.1} parent=1 // pred_check_branch
      %38 = sbr.rel (0) target = $region29
    $region28: #{tpu_custom_call.1} parent=1 // pred_region
      _
    $region29: #{tpu_custom_call.1} parent=1 // pred_fallthru
      _
    // Predicated region
    $region30: #{tpu_custom_call.1} parent=1 // pred_check
      _
    $region31: #{tpu_custom_call.1} parent=1 // pred_check_branch
      %40 = sbr.rel (0) target = $region33
    $region32: #{tpu_custom_call.1} parent=1 // pred_region
      %41 = dma.done [#allocation4], 2048
    $region33: #{tpu_custom_call.1} parent=1 // pred_fallthru
      _
    %v42 = vld [vmem:[%s0] sm:$0xff]
    %v43 = vld [vmem:[%s0 + $0x8] sm:$0x3]
    %v44 = vld [vmem:[%s1] sm:$0x1]
    %46 = vset.pattern.permute.xlu0 0
    %47 = vperm.xlu0 %46, %v42
    %v48 = vpop.permute.xlu0 %47
    %51 = vset.pattern.permute.xlu0 0
    %52 = vperm.xlu0 %51, %v43
    %v53 = vpop.permute.xlu0 %52
    %v56 = vlaneseq
    %v57 = vshrl.u32 %v56, 7
    %v58 = vsub.s32 0, %v57
    %v59 = vrot.slane %v44, %v58
    %v61 = vmul.f32 %v48, %v59
    %v62 = vmul.f32 %v53, %v59
    %v63 = vld [vmem:[%s2] sm:$0x1]
    %v65 = vlaneseq
    %v66 = vshrl.u32 %v65, 7
    %v67 = vsub.s32 0, %v66
    %v68 = vrot.slane %v63, %v67
    %v70 = vadd.f32 %v61, %v68
    %v71 = vadd.f32 %v62, %v68
    %v72 = vmax.f32 %v70, 0.0
    %v73 = vmax.f32 %v71, 0.0
    %v74 = vld [vmem:[#allocation3] sm:$0xff]
    %v75 = vld [vmem:[#allocation3 + $0x8] sm:$0xff]
    %v76 = vld [vmem:[#allocation3 + $0x10] sm:$0xff]
    %v77 = vld [vmem:[#allocation3 + $0x18] sm:$0xff]
    %v78 = vld [vmem:[#allocation3 + $0x20] sm:$0xff]
    %v79 = vld [vmem:[#allocation3 + $0x28] sm:$0xff]
    %v80 = vld [vmem:[#allocation3 + $0x30] sm:$0xff]
    %v81 = vld [vmem:[#allocation3 + $0x38] sm:$0xff]
    %v82 = vld [vmem:[#allocation3 + $0x40] sm:$0xff]
    %v83 = vld [vmem:[#allocation3 + $0x48] sm:$0xff]
    %v84 = vld [vmem:[#allocation3 + $0x50] sm:$0xff]
    %v85 = vld [vmem:[#allocation3 + $0x58] sm:$0xff]
    %v86 = vld [vmem:[#allocation3 + $0x60] sm:$0xff]
    %v87 = vld [vmem:[#allocation3 + $0x68] sm:$0xff]
    %v88 = vld [vmem:[#allocation3 + $0x70] sm:$0xff]
    %v89 = vld [vmem:[#allocation3 + $0x78] sm:$0xff]
    %v90 = vld [vmem:[%s4] sm:$0x1]
    %v92 = vlaneseq
    %v93 = vshrl.u32 %v92, 7
    %v94 = vsub.s32 0, %v93
    %v95 = vrot.slane %v90, %v94
    %97 = vmatprep.subr.mxu0 0.0
    %98 = vmatpush1.msra.mxu0 %v89
    %99 = vmatprep.subr.mxu0 0.0
    %100 = vmatpush1.msra.mxu0 %v88
    %101 = vmatprep.subr.mxu0 0.0
    %102 = vmatpush1.msra.mxu0 %v87
    %103 = vmatprep.subr.mxu0 0.0
    %104 = vmatpush1.msra.mxu0 %v86
    %105 = vmatprep.subr.mxu0 0.0
    %106 = vmatpush1.msra.mxu0 %v85
    %107 = vmatprep.subr.mxu0 0.0
    %108 = vmatpush1.msra.mxu0 %v84
    %109 = vmatprep.subr.mxu0 0.0
    %110 = vmatpush1.msra.mxu0 %v83
    %111 = vmatprep.subr.mxu0 0.0
    %112 = vmatpush1.msra.mxu0 %v82
    %113 = vmatprep.subr.mxu0 0.0
    %114 = vmatpush1.msra.mxu0 %v81
    %115 = vmatprep.subr.mxu0 0.0
    %116 = vmatpush1.msra.mxu0 %v80
    %117 = vmatprep.subr.mxu0 0.0
    %118 = vmatpush1.msra.mxu0 %v79
    %119 = vmatprep.subr.mxu0 0.0
    %120 = vmatpush1.msra.mxu0 %v78
    %121 = vmatprep.subr.mxu0 0.0
    %122 = vmatpush1.msra.mxu0 %v77
    %123 = vmatprep.subr.mxu0 0.0
    %124 = vmatpush1.msra.mxu0 %v76
    %125 = vmatprep.subr.mxu0 0.0
    %126 = vmatpush1.msra.mxu0 %v75
    %127 = vmatprep.subr.mxu0 0.0
    %128 = vmatpush1.msra.mxu0 %v74
    %129 = vmatprep.subr.mxu0 0.0
    %130 = vmatpush2.msra.mxu0 0.0
    %131 = vmatprep.subr.mxu0 0.0
    %132 = vmatpush2.msra.mxu0 0.0
    %133 = vmatprep.subr.mxu0 0.0
    %134 = vmatpush2.msra.mxu0 0.0
    %135 = vmatprep.subr.mxu0 0.0
    %136 = vmatpush2.msra.mxu0 0.0
    %137 = vmatprep.subr.mxu0 0.0
    %138 = vmatpush2.msra.mxu0 0.0
    %139 = vmatprep.subr.mxu0 0.0
    %140 = vmatpush2.msra.mxu0 0.0
    %141 = vmatprep.subr.mxu0 0.0
    %142 = vmatpush2.msra.mxu0 0.0
    %143 = vmatprep.subr.mxu0 0.0
    %144 = vmatpush2.msra.mxu0 0.0
    %145 = vmatprep.subr.mxu0 0.0
    %146 = vmatpush2.msra.mxu0 0.0
    %147 = vmatprep.subr.mxu0 0.0
    %148 = vmatpush2.msra.mxu0 0.0
    %149 = vmatprep.subr.mxu0 0.0
    %150 = vmatpush2.msra.mxu0 0.0
    %151 = vmatprep.subr.mxu0 0.0
    %152 = vmatpush2.msra.mxu0 0.0
    %153 = vmatprep.subr.mxu0 0.0
    %154 = vmatpush2.msra.mxu0 0.0
    %155 = vmatprep.subr.mxu0 0.0
    %156 = vmatpush2.msra.mxu0 0.0
    %157 = vmatprep.subr.mxu0 0.0
    %158 = vmatpush2.msra.mxu0 0.0
    %159 = vmatprep.subr.mxu0 0.0
    %160 = vmatpush2.msra.mxu0 0.0
    %161 = vmatprep.mubr.f32.mxu0 0.0
    %162 = vmatmul.mubr.f32.gmra.mxu0 %v72
    %v163 = vpop.f32.mrf.mxu0
    %v164 = vadd.f32 %v95, %v163
    %v165 = vpop.f32.mrf.mxu0
    %166 = vmatprep.mubr.f32.mxu0 0.0
    %167 = vmatmul.mubr.f32.gmra.mxu0 %v73
    %v168 = vpop.f32.mrf.mxu0
    %v169 = vadd.f32 %v95, %v168
    %v170 = vpop.f32.mrf.mxu0
    %171 = vdwg.mxu0
    %v172 = vmax.f32 %v164, 0.0
    %v173 = vmax.f32 %v169, 0.0
    %v174 = vld [vmem:[%s5] sm:$0x1]
    %v176 = vlaneseq
    %v177 = vshrl.u32 %v176, 7
    %v178 = vsub.s32 0, %v177
    %v179 = vrot.slane %v174, %v178
    %v181 = vmul.f32 %v172, %v179
    %v182 = vmul.f32 %v173, %v179
    %183 = vadd.xlane.f32.xlu0 %v181
    %v184 = vpop.xlane.xlu0 %183
    %vm185 = vcmask 1041408
    %v186 = vsel %vm185, %v182, 0.0
    %187 = vadd.xlane.f32.xlu0 %v186
    %v188 = vpop.xlane.xlu0 %187
    %v189 = vld [vmem:[#allocation2] sm:$0x1]
    %v191 = vlaneseq
    %v192 = vshrl.u32 %v191, 7
    %v193 = vsub.s32 0, %v192
    %v194 = vrot.slane %v189, %v193
    %v196 = vadd.f32 %v184, %v194
    %v197 = vadd.f32 %v188, %v194
    %vm198 = vcmask 7168
    %199 = vst.msk [vmem:[%s7] sm:$0xff] %vm198, %v196
    %vm200 = vcmask 1024
    %201 = vst.msk [vmem:[%s7 + $0x8] sm:$0x3] %vm200, %v197
    // Predicated region
    $region34: #{tpu_custom_call.1} parent=1 // pred_check
      _
    $region35: #{tpu_custom_call.1} parent=1 // pred_check_branch
      %203 = sbr.rel (0) target = $region37
    $region36: #{tpu_custom_call.1} parent=1 // pred_region
      _
    $region37: #{tpu_custom_call.1} parent=1 // pred_fallthru
      _
    // Predicated region
    $region38: #{tpu_custom_call.1} parent=1 // pred_check
      _
    $region39: #{tpu_custom_call.1} parent=1 // pred_check_branch
      %205 = sbr.rel (0) target = $region41
    $region40: #{tpu_custom_call.1} parent=1 // pred_region
      _
    $region41: #{tpu_custom_call.1} parent=1 // pred_fallthru
      _
    %206 = vsyncpa [#allocation4], 1

</llo_original>
